<compile_context>
chip_gen: v7x
topology: tpu7x:2x2x1
jax: 0.10.0
libtpu: 0.0.40
codegen_flags: <defaults>
</compile_context>

<pallas_src>
import jax
import jax.numpy as jnp
import numpy as np
from jax.experimental import pallas as pl
from jax.experimental.pallas import tpu as pltpu


# ----------------------------- Pallas kernel ------------------------------ #
def simple_cnn_kernel(xf_ref, gt_ref, cb_ref, w12_ref, b12_ref, out_ref):
    # xf_ref : [TILE_B, H*W]   flattened raw image tile (pipelined over the batch grid)
    # gt_ref : [H*W, P_pad]    conv-as-matmul operator (filter taps + zero padding folded in)
    # cb_ref : [1, P_pad]      conv bias row (f32, added pre-sigmoid)
    # w12_ref: [P_pad, C]      pre-fused fc1@fc2 weight (padded rows >= P are zero)
    # b12_ref: [1, C]          pre-fused bias
    # out_ref: [TILE_B, C]     real num_classes columns only (no padded writeback)
    #
    # Conv (MXU): [TILE_B, H*W] x [H*W, P_pad] -> f32 accumulation.
    conv = jnp.dot(xf_ref[...], gt_ref[...],
                   preferred_element_type=jnp.float32) + cb_ref[...]
    # Sigmoid (EUP).  Flatten is implicit: conv columns are already (oh, ow) row-major.
    h = jax.nn.sigmoid(conv)
    # dropout_fc (p=0.2): identity in eval mode (precondition for the fc1/fc2 fusion).
    # TODO(synk): training-mode dropout (pltpu.prng_* mask + 1/(1-p)) not implemented.
    # Fused fc1->fc2 (MXU).  Padded conv columns (>= P) hit zero rows of W12.
    out = jnp.dot(h.astype(w12_ref.dtype), w12_ref[...],
                  preferred_element_type=jnp.float32) + b12_ref[...]
    out_ref[...] = out.astype(out_ref.dtype)


# ------------------------------ JAX wrapper -------------------------------- #
def _round_up(x, m):
    return (x + m - 1) // m * m


def _build_conv_matrix(conv_w, H, W, OH, OW, kernel_size, stride, pad, p_pad):
    """Dense operator Gt [H*W, p_pad] with (x.reshape(B, H*W) @ Gt)[:, oh*OW+ow]
    == conv2d(x, conv_w, stride, padding=pad)[:, 0, oh, ow].  Zero padding of the
    image is folded in (out-of-range taps simply get weight 0)."""
    Wk = conv_w[0, 0].astype(jnp.float32)                                    # [K, K]
    k = jnp.arange(kernel_size)
    rows = jnp.arange(OH)[:, None] * stride + k[None, :] - pad               # [OH, K]
    cols = jnp.arange(OW)[:, None] * stride + k[None, :] - pad               # [OW, K]
    A = (rows[:, :, None] == jnp.arange(H)[None, None, :]).astype(jnp.float32)   # [OH, K, H]
    Bm = (cols[:, :, None] == jnp.arange(W)[None, None, :]).astype(jnp.float32)  # [OW, K, W]
    G4 = jnp.einsum('ab,xah,ybw->xyhw', Wk, A, Bm)                           # [OH, OW, H, W]
    G = G4.reshape(OH * OW, H * W).T                                         # [H*W, P]
    return jnp.pad(G, ((0, 0), (0, p_pad - OH * OW)))


def simple_cnn_forward(x, params, *, kernel_size, stride, num_neurons, num_classes,
                       tile_b=512, use_bf16=False):
    conv_w, conv_b, fc1_w, fc1_b, fc2_w, fc2_b = params
    B, C, H, W = x.shape
    assert C == 1, "kernel targets SimpleCNN defaults (in_channels=1, layer_filter=1)"
    pad = kernel_size // 2
    OH = (H + 2 * pad - kernel_size) // stride + 1
    OW = (W + 2 * pad - kernel_size) // stride + 1
    P = OH * OW
    HW = H * W
    P_pad = _round_up(P, 128)            # lane-dense conv columns

    stream_dtype = jnp.bfloat16 if use_bf16 else jnp.float32

    # ---- parameter prep (once; VMEM-resident via constant index_maps) ----
    gt = _build_conv_matrix(conv_w, H, W, OH, OW, kernel_size, stride, pad,
                            P_pad).astype(stream_dtype)
    cb_row = jnp.broadcast_to(conv_b.astype(jnp.float32).reshape(1, 1), (1, P_pad))
    # Pre-fused fc1 -> fc2 (valid because dropout is identity in eval mode).
    w12 = (fc1_w.T.astype(jnp.float32) @ fc2_w.T.astype(jnp.float32))        # [P, C]
    w12 = jnp.pad(w12, ((0, P_pad - P), (0, 0))).astype(stream_dtype)        # [P_pad, C]
    b12 = (fc1_b.astype(jnp.float32) @ fc2_w.T.astype(jnp.float32)
           + fc2_b.astype(jnp.float32)).reshape(1, num_classes)              # [1, C]

    # ---- batch tiling ----
    # Default: one big tile (single grid step) for small/medium batches; callers with
    # very large batches (or targeting v7x's 2 TCs) can pass a smaller tile_b.
    align = 16 if use_bf16 else 8
    tile_b = max(align, min(_round_up(tile_b, align), _round_up(B, align)))
    B_pad = _round_up(B, tile_b)
    xf = x[:, 0].reshape(B, HW).astype(stream_dtype)
    if B_pad != B:
        xf = jnp.pad(xf, ((0, B_pad - B), (0, 0)))
    grid = (B_pad // tile_b,)

    const = lambda i: (0, 0)   # parameters: same block every step -> VMEM resident
    out = pl.pallas_call(
        simple_cnn_kernel,
        out_shape=jax.ShapeDtypeStruct((B_pad, num_classes), jnp.float32),
        grid=grid,
        in_specs=[
            pl.BlockSpec((tile_b, HW), lambda i: (i, 0)),   # image tile (pipelined)
            pl.BlockSpec((HW, P_pad), const),               # conv operator
            pl.BlockSpec((1, P_pad), const),                # conv bias row
            pl.BlockSpec((P_pad, num_classes), const),      # fused fc weight
            pl.BlockSpec((1, num_classes), const),          # fused fc bias
        ],
        # Full-extent class dim -> only real logits written back (no 64x padded store).
        out_specs=pl.BlockSpec((tile_b, num_classes), lambda i: (i, 0)),
        compiler_params=pltpu.CompilerParams(
            dimension_semantics=("parallel",)),             # megacore-shardable batch axis
    )(xf, gt, cb_row, w12, b12)
    return out[:B]


# ----------------------------- Reference (JAX) ----------------------------- #
def simple_cnn_reference(x, params, *, kernel_size, stride):
    conv_w, conv_b, fc1_w, fc1_b, fc2_w, fc2_b = params
    pad = kernel_size // 2
    conv = jax.lax.conv_general_dilated(
        x, conv_w, window_strides=(stride, stride),
        padding=[(pad, pad), (pad, pad)]) + conv_b.reshape(1, -1, 1, 1)
    h = jax.nn.sigmoid(conv).reshape(x.shape[0], -1)
    h1 = h @ fc1_w.T + fc1_b
    return h1 @ fc2_w.T + fc2_b


# --------------------------------- main ------------------------------------ #
if __name__ == "__main__":
    # Module hyperparameters (small but consistent with SimpleCNN defaults).
    kernel_size = 16
    stride = 2
    num_neurons = 32
    layer_filter = 1
    input_size = 16          # small spatial size for the synthetic run
    in_channels = 1
    num_classes = 2
    batch = 16

    pad = kernel_size // 2
    out_hw = (input_size + 2 * pad - kernel_size) // stride + 1
    output_size = out_hw * out_hw   # fc1 input features

    key = jax.random.PRNGKey(0)
    kx, k1, k2, k3, k4, k5, k6 = jax.random.split(key, 7)

    # Deterministic synthetic parameters (PyTorch shapes).
    conv_w = 0.1 * jax.random.normal(
        k1, (layer_filter, in_channels, kernel_size, kernel_size), jnp.float32)
    conv_b = 0.1 * jax.random.normal(k2, (layer_filter,), jnp.float32)
    fc1_w = 0.1 * jax.random.normal(k3, (num_neurons, output_size), jnp.float32)
    fc1_b = 0.1 * jax.random.normal(k4, (num_neurons,), jnp.float32)
    fc2_w = 0.1 * jax.random.normal(k5, (num_classes, num_neurons), jnp.float32)
    fc2_b = 0.1 * jax.random.normal(k6, (num_classes,), jnp.float32)
    params = (conv_w, conv_b, fc1_w, fc1_b, fc2_w, fc2_b)

    # Input: NCHW, batch=16, channels=1, spatial=16x16.
    x = jax.random.normal(kx, (batch, in_channels, input_size, input_size), jnp.float32)

    # Default tile_b clamps to the batch -> a single grid step for this tiny run.
    # use_bf16=False keeps full f32 streaming so the 1e-4 tolerance holds.
    out = simple_cnn_forward(x, params, kernel_size=kernel_size, stride=stride,
                             num_neurons=num_neurons, num_classes=num_classes,
                             tile_b=512, use_bf16=False)
    out = jax.block_until_ready(out)

    ref = simple_cnn_reference(x, params, kernel_size=kernel_size, stride=stride)
    np.testing.assert_allclose(np.asarray(out), np.asarray(ref), rtol=1e-4, atol=1e-4)

    print("KERNEL_OK")
</pallas_src>

<mosaic_0001>
module attributes {stable_mosaic.version = 11 : i64} {
  func.func @simple_cnn_kernel(%arg0: i32, %arg1: memref<16x256xf32, #tpu.memory_space<vmem>>, %arg2: memref<256x128xf32, #tpu.memory_space<vmem>>, %arg3: memref<1x128xf32, #tpu.memory_space<vmem>>, %arg4: memref<128x2xf32, #tpu.memory_space<vmem>>, %arg5: memref<1x2xf32, #tpu.memory_space<vmem>>, %arg6: memref<16x2xf32, #tpu.memory_space<vmem>>) attributes {dimension_semantics = [#tpu.dimension_semantics<parallel>], iteration_bounds = array<i64: 1>, scalar_prefetch = 0 : i64, scratch_operands = 0 : i64, tpu.core_type = #tpu.core_type<tc>, window_params = [{transform_indices = @transform_0, window_bounds = array<i64: 16, 256>}, {pipeline_mode = #tpu.pipeline_mode<synchronous>, transform_indices = @transform_1, window_bounds = array<i64: 256, 128>}, {pipeline_mode = #tpu.pipeline_mode<synchronous>, transform_indices = @transform_2, window_bounds = array<i64: 1, 128>}, {pipeline_mode = #tpu.pipeline_mode<synchronous>, transform_indices = @transform_3, window_bounds = array<i64: 128, 2>}, {pipeline_mode = #tpu.pipeline_mode<synchronous>, transform_indices = @transform_4, window_bounds = array<i64: 1, 2>}, {transform_indices = @transform_5, window_bounds = array<i64: 16, 2>}]} {
    %c0 = arith.constant 0 : index
    %c0_0 = arith.constant 0 : index
    %0 = vector.load %arg1[%c0, %c0_0] : memref<16x256xf32, #tpu.memory_space<vmem>>, vector<16x256xf32>
    %c0_1 = arith.constant 0 : index
    %c0_2 = arith.constant 0 : index
    %1 = vector.load %arg2[%c0_1, %c0_2] : memref<256x128xf32, #tpu.memory_space<vmem>>, vector<256x128xf32>
    %cst = arith.constant dense<0.000000e+00> : vector<16x128xf32>
    %2 = tpu.matmul %0, %1, %cst {dimension_numbers = #tpu.dot_dimension_numbers<[1], [0], [0], [1], [0, 0, 1, 1], [], []>} : vector<16x256xf32>, vector<256x128xf32>, vector<16x128xf32> -> vector<16x128xf32>
    %c0_3 = arith.constant 0 : index
    %c0_4 = arith.constant 0 : index
    %3 = vector.load %arg3[%c0_3, %c0_4] : memref<1x128xf32, #tpu.memory_space<vmem>>, vector<1x128xf32>
    %4 = vector.broadcast %3 : vector<1x128xf32> to vector<16x128xf32>
    %5 = arith.addf %2, %4 : vector<16x128xf32>
    %6 = arith.negf %5 : vector<16x128xf32>
    %7 = math.exp %6 : vector<16x128xf32>
    %cst_5 = arith.constant 1.000000e+00 : f32
    %8 = vector.broadcast %cst_5 : f32 to vector<16x128xf32>
    %9 = arith.addf %8, %7 : vector<16x128xf32>
    %10 = arith.divf %8, %9 : vector<16x128xf32>
    %c0_6 = arith.constant 0 : index
    %c0_7 = arith.constant 0 : index
    %11 = vector.load %arg4[%c0_6, %c0_7] : memref<128x2xf32, #tpu.memory_space<vmem>>, vector<128x2xf32>
    %cst_8 = arith.constant dense<0.000000e+00> : vector<16x2xf32>
    %12 = tpu.matmul %10, %11, %cst_8 {dimension_numbers = #tpu.dot_dimension_numbers<[1], [0], [0], [1], [0, 0, 1, 1], [], []>} : vector<16x128xf32>, vector<128x2xf32>, vector<16x2xf32> -> vector<16x2xf32>
    %c0_9 = arith.constant 0 : index
    %c0_10 = arith.constant 0 : index
    %13 = vector.load %arg5[%c0_9, %c0_10] : memref<1x2xf32, #tpu.memory_space<vmem>>, vector<1x2xf32>
    %14 = vector.broadcast %13 : vector<1x2xf32> to vector<16x2xf32>
    %15 = arith.addf %12, %14 : vector<16x2xf32>
    %c0_11 = arith.constant 0 : index
    %c0_12 = arith.constant 0 : index
    %16 = vector.load %arg6[%c0_11, %c0_12] : memref<16x2xf32, #tpu.memory_space<vmem>>, vector<16x2xf32>
    tpu.vector_store %arg6[%c0_11, %c0_12], %15 {strides = array<i32>} : memref<16x2xf32, #tpu.memory_space<vmem>>, vector<16x2xf32>,
    return
  }
  func.func @transform_0(%arg0: i32) -> (i32, i32) {
    %c0_i32 = arith.constant 0 : i32
    %c0_i32_0 = arith.constant 0 : i32
    return %arg0, %c0_i32 : i32, i32
  }
  func.func @transform_1(%arg0: i32) -> (i32, i32) {
    %c0_i32 = arith.constant 0 : i32
    %c0_i32_0 = arith.constant 0 : i32
    %c0_i32_1 = arith.constant 0 : i32
    return %c0_i32, %c0_i32_0 : i32, i32
  }
  func.func @transform_2(%arg0: i32) -> (i32, i32) {
    %c0_i32 = arith.constant 0 : i32
    %c0_i32_0 = arith.constant 0 : i32
    %c0_i32_1 = arith.constant 0 : i32
    return %c0_i32, %c0_i32_0 : i32, i32
  }
  func.func @transform_3(%arg0: i32) -> (i32, i32) {
    %c0_i32 = arith.constant 0 : i32
    %c0_i32_0 = arith.constant 0 : i32
    %c0_i32_1 = arith.constant 0 : i32
    return %c0_i32, %c0_i32_0 : i32, i32
  }
  func.func @transform_4(%arg0: i32) -> (i32, i32) {
    %c0_i32 = arith.constant 0 : i32
    %c0_i32_0 = arith.constant 0 : i32
    %c0_i32_1 = arith.constant 0 : i32
    return %c0_i32, %c0_i32_0 : i32, i32
  }
  func.func @transform_5(%arg0: i32) -> (i32, i32) {
    %c0_i32 = arith.constant 0 : i32
    %c0_i32_0 = arith.constant 0 : i32
    return %arg0, %c0_i32 : i32, i32
  }
}

</mosaic_0001>

<llo_original>
// kernel: tpu_custom_call.1
$region0: #{tpu_custom_call.1}
  #allocation0 [shape = 'u32[]', space=smem, size = 0x4, offset = 0x4, fixed_abs, tag = 'smem constant byte address 0x4 - core index']
  #allocation1 [shape = 'u32[144,128]{1,0:T(1,128)}', space=vmem, size = 0x12000, scoped, tag = 'internal scratch']
  %s0 = inlined_call_operand.vmem [shape: f32[16,256], index: 0, kind: input, shape index: {}]
  %s1 = inlined_call_operand.hbm [shape: f32[256,128], index: 1, kind: input, shape index: {}]
  %s2 = inlined_call_operand.vmem [shape: f32[1,128], index: 2, kind: input, shape index: {}]
  %s3 = inlined_call_operand.vmem [shape: f32[128,2], index: 3, kind: input, shape index: {}]
  %s4 = inlined_call_operand.vmem [shape: f32[1,2], index: 4, kind: input, shape index: {}]
  %s5 = inlined_call_operand.vmem [shape: f32[16,2], index: 5, kind: output, shape index: {}]
  %s6 = sld [smem:[#allocation0]]
  $region34: #{tpu_custom_call.1} parent=0
    _
  %s8 = ssub.s32 1, %s6
  %s9 = scalar_select 0, %s8, %s6
  $region1: #{tpu_custom_call.1} parent=0
    #allocation2 [shape = 'u8[131072]{0}', space=vmem, size = 0x20000, scoped, tag = 'input window, operand 1, single buffered']
    #allocation3 [shape = 's32[1]{0}', space=sflag, size = 0x4, scoped, tag = 'scoped memory for tpu_custom_call.1']
    %10 = vsyncpa [#allocation3], 0
    // Predicated region
    $region2: #{tpu_custom_call.1} parent=1 // pred_check
      _
    $region3: #{tpu_custom_call.1} parent=1 // pred_check_branch
      %12 = sbr.rel (0) target = $region5
    $region4: #{tpu_custom_call.1} parent=1 // pred_region
      _
    $region5: #{tpu_custom_call.1} parent=1 // pred_fallthru
      _
    // Predicated region
    $region6: #{tpu_custom_call.1} parent=1 // pred_check
      _
    $region7: #{tpu_custom_call.1} parent=1 // pred_check_branch
      %14 = sbr.rel (0) target = $region9
    $region8: #{tpu_custom_call.1} parent=1 // pred_region
      %s16 = ssub.s32 4096, 4096
      %17 = vsyncadd [#allocation3], %s16
      %s18 = sshll.u32 [#allocation2], 4
      %s19 = int_to_ptr.vmem [resolvable:$true] %s18
      %24 = dma.hbm_to_vmem [thread:$0]  %s1, 4096, %s19, [#allocation3], 128, 128, 8
    $region9: #{tpu_custom_call.1} parent=1 // pred_fallthru
      _
    // Predicated region
    $region10: #{tpu_custom_call.1} parent=1 // pred_check
      _
    $region11: #{tpu_custom_call.1} parent=1 // pred_check_branch
      %26 = sbr.rel (0) target = $region13
    $region12: #{tpu_custom_call.1} parent=1 // pred_region
      _
    $region13: #{tpu_custom_call.1} parent=1 // pred_fallthru
      _
    // Predicated region
    $region14: #{tpu_custom_call.1} parent=1 // pred_check
      _
    $region15: #{tpu_custom_call.1} parent=1 // pred_check_branch
      %28 = sbr.rel (0) target = $region17
    $region16: #{tpu_custom_call.1} parent=1 // pred_region
      _
    $region17: #{tpu_custom_call.1} parent=1 // pred_fallthru
      _
    // Predicated region
    $region18: #{tpu_custom_call.1} parent=1 // pred_check
      _
    $region19: #{tpu_custom_call.1} parent=1 // pred_check_branch
      %30 = sbr.rel (0) target = $region21
    $region20: #{tpu_custom_call.1} parent=1 // pred_region
      _
    $region21: #{tpu_custom_call.1} parent=1 // pred_fallthru
      _
    // Predicated region
    $region22: #{tpu_custom_call.1} parent=1 // pred_check
      _
    $region23: #{tpu_custom_call.1} parent=1 // pred_check_branch
      %32 = sbr.rel (0) target = $region25
    $region24: #{tpu_custom_call.1} parent=1 // pred_region
      %33 = dma.done [#allocation3], 4096
    $region25: #{tpu_custom_call.1} parent=1 // pred_fallthru
      _
    %v34 = vld [vmem:[%s0] sm:$0xff]
    %v35 = vld [vmem:[%s0 + $0x8] sm:$0xff]
    %v36 = vld [vmem:[%s0 + $0x10] sm:$0xff]
    %v37 = vld [vmem:[%s0 + $0x18] sm:$0xff]
    %v38 = vld [vmem:[#allocation2] sm:$0xff]
    %v39 = vld [vmem:[#allocation2 + $0x8] sm:$0xff]
    %v40 = vld [vmem:[#allocation2 + $0x10] sm:$0xff]
    %v41 = vld [vmem:[#allocation2 + $0x18] sm:$0xff]
    %v42 = vld [vmem:[#allocation2 + $0x20] sm:$0xff]
    %v43 = vld [vmem:[#allocation2 + $0x28] sm:$0xff]
    %v44 = vld [vmem:[#allocation2 + $0x30] sm:$0xff]
    %v45 = vld [vmem:[#allocation2 + $0x38] sm:$0xff]
    %v46 = vld [vmem:[#allocation2 + $0x40] sm:$0xff]
    %v47 = vld [vmem:[#allocation2 + $0x48] sm:$0xff]
    %v48 = vld [vmem:[#allocation2 + $0x50] sm:$0xff]
    %v49 = vld [vmem:[#allocation2 + $0x58] sm:$0xff]
    %v50 = vld [vmem:[#allocation2 + $0x60] sm:$0xff]
    %v51 = vld [vmem:[#allocation2 + $0x68] sm:$0xff]
    %v52 = vld [vmem:[#allocation2 + $0x70] sm:$0xff]
    %v53 = vld [vmem:[#allocation2 + $0x78] sm:$0xff]
    %v54 = vld [vmem:[#allocation2 + $0x80] sm:$0xff]
    %v55 = vld [vmem:[#allocation2 + $0x88] sm:$0xff]
    %v56 = vld [vmem:[#allocation2 + $0x90] sm:$0xff]
    %v57 = vld [vmem:[#allocation2 + $0x98] sm:$0xff]
    %v58 = vld [vmem:[#allocation2 + $0xa0] sm:$0xff]
    %v59 = vld [vmem:[#allocation2 + $0xa8] sm:$0xff]
    %v60 = vld [vmem:[#allocation2 + $0xb0] sm:$0xff]
    %v61 = vld [vmem:[#allocation2 + $0xb8] sm:$0xff]
    %v62 = vld [vmem:[#allocation2 + $0xc0] sm:$0xff]
    %v63 = vld [vmem:[#allocation2 + $0xc8] sm:$0xff]
    %v64 = vld [vmem:[#allocation2 + $0xd0] sm:$0xff]
    %v65 = vld [vmem:[#allocation2 + $0xd8] sm:$0xff]
    %v66 = vld [vmem:[#allocation2 + $0xe0] sm:$0xff]
    %v67 = vld [vmem:[#allocation2 + $0xe8] sm:$0xff]
    %v68 = vld [vmem:[#allocation2 + $0xf0] sm:$0xff]
    %v69 = vld [vmem:[#allocation2 + $0xf8] sm:$0xff]
    %v70 = vld [vmem:[%s2] sm:$0x1]
    %v72 = vlaneseq
    %v73 = vshrl.u32 %v72, 7
    %v74 = vsub.s32 0, %v73
    %v75 = vrot.slane %v70, %v74
    %77 = vmatprep.subr.mxu0 0.0
    %78 = vmatpush1.msra.mxu0 %v38
    %79 = vmatprep.subr.mxu0 0.0
    %80 = vmatpush1.msra.mxu0 %v39
    %81 = vmatprep.subr.mxu0 0.0
    %82 = vmatpush1.msra.mxu0 %v40
    %83 = vmatprep.subr.mxu0 0.0
    %84 = vmatpush1.msra.mxu0 %v41
    %85 = vmatprep.subr.mxu0 0.0
    %86 = vmatpush1.msra.mxu0 %v42
    %87 = vmatprep.subr.mxu0 0.0
    %88 = vmatpush1.msra.mxu0 %v43
    %89 = vmatprep.subr.mxu0 0.0
    %90 = vmatpush1.msra.mxu0 %v44
    %91 = vmatprep.subr.mxu0 0.0
    %92 = vmatpush1.msra.mxu0 %v45
    %93 = vmatprep.subr.mxu0 0.0
    %94 = vmatpush1.msra.mxu0 %v46
    %95 = vmatprep.subr.mxu0 0.0
    %96 = vmatpush1.msra.mxu0 %v47
    %97 = vmatprep.subr.mxu0 0.0
    %98 = vmatpush1.msra.mxu0 %v48
    %99 = vmatprep.subr.mxu0 0.0
    %100 = vmatpush1.msra.mxu0 %v49
    %101 = vmatprep.subr.mxu0 0.0
    %102 = vmatpush1.msra.mxu0 %v50
    %103 = vmatprep.subr.mxu0 0.0
    %104 = vmatpush1.msra.mxu0 %v51
    %105 = vmatprep.subr.mxu0 0.0
    %106 = vmatpush1.msra.mxu0 %v52
    %107 = vmatprep.subr.mxu0 0.0
    %108 = vmatpush1.msra.mxu0 %v53
    %109 = vmatprep.subr.mxu0 0.0
    %110 = vmatpush1.msra.mxu0 %v54
    %111 = vmatprep.subr.mxu0 0.0
    %112 = vmatpush1.msra.mxu0 %v55
    %113 = vmatprep.subr.mxu0 0.0
    %114 = vmatpush1.msra.mxu0 %v56
    %115 = vmatprep.subr.mxu0 0.0
    %116 = vmatpush1.msra.mxu0 %v57
    %117 = vmatprep.subr.mxu0 0.0
    %118 = vmatpush1.msra.mxu0 %v58
    %119 = vmatprep.subr.mxu0 0.0
    %120 = vmatpush1.msra.mxu0 %v59
    %121 = vmatprep.subr.mxu0 0.0
    %122 = vmatpush1.msra.mxu0 %v60
    %123 = vmatprep.subr.mxu0 0.0
    %124 = vmatpush1.msra.mxu0 %v61
    %125 = vmatprep.subr.mxu0 0.0
    %126 = vmatpush1.msra.mxu0 %v62
    %127 = vmatprep.subr.mxu0 0.0
    %128 = vmatpush1.msra.mxu0 %v63
    %129 = vmatprep.subr.mxu0 0.0
    %130 = vmatpush1.msra.mxu0 %v64
    %131 = vmatprep.subr.mxu0 0.0
    %132 = vmatpush1.msra.mxu0 %v65
    %133 = vmatprep.subr.mxu0 0.0
    %134 = vmatpush1.msra.mxu0 %v66
    %135 = vmatprep.subr.mxu0 0.0
    %136 = vmatpush1.msra.mxu0 %v67
    %137 = vmatprep.subr.mxu0 0.0
    %138 = vmatpush1.msra.mxu0 %v68
    %139 = vmatprep.subr.mxu0 0.0
    %140 = vmatpush1.msra.mxu0 %v69
    %141 = vmatprep.mubr.f32.mxu0 %v35
    %142 = vmatmul.mubr.f32.gmra.mrb[0].mxu0 %v34
    %v143 = vpop.f32.mrb[0].mxu0
    %v144 = vadd.f32 %v75, %v143
    %v145 = vpop.f32.mrb[0].mxu0
    %146 = vmatprep.mubr.f32.mxu0 %v37
    %147 = vmatmul.mubr.f32.gmra.mrb[0].mxu0 %v36
    %v148 = vpop.f32.mrb[0].mxu0
    %v149 = vadd.f32 %v75, %v148
    %v150 = vpop.f32.mrb[0].mxu0
    %151 = vdwg.mxu0
    %v152 = vxor.u32 %v144, 2147483648
    %v153 = vxor.u32 %v149, 2147483648
    %v154 = vmul.f32 %v152, 1.442695
    %v155 = vpow.pop %v154
    %v156 = vmul.f32 %v153, 1.442695
    %v157 = vpow.pop %v156
    %v158 = vadd.f32 %v155, 1.0
    %v159 = vadd.f32 %v157, 1.0
    %v160 = vrcp.pop %v158
    %v161 = vmul.f32 1.0, %v160
    %v162 = vrcp.pop %v159
    %v163 = vmul.f32 1.0, %v162
    %v164 = vld [vmem:[%s3] sm:$0xff]
    %v165 = vld [vmem:[%s3 + $0x8] sm:$0xff]
    %v166 = vld [vmem:[%s3 + $0x10] sm:$0xff]
    %v167 = vld [vmem:[%s3 + $0x18] sm:$0xff]
    %v168 = vld [vmem:[%s3 + $0x20] sm:$0xff]
    %v169 = vld [vmem:[%s3 + $0x28] sm:$0xff]
    %v170 = vld [vmem:[%s3 + $0x30] sm:$0xff]
    %v171 = vld [vmem:[%s3 + $0x38] sm:$0xff]
    %v172 = vld [vmem:[%s3 + $0x40] sm:$0xff]
    %v173 = vld [vmem:[%s3 + $0x48] sm:$0xff]
    %v174 = vld [vmem:[%s3 + $0x50] sm:$0xff]
    %v175 = vld [vmem:[%s3 + $0x58] sm:$0xff]
    %v176 = vld [vmem:[%s3 + $0x60] sm:$0xff]
    %v177 = vld [vmem:[%s3 + $0x68] sm:$0xff]
    %v178 = vld [vmem:[%s3 + $0x70] sm:$0xff]
    %v179 = vld [vmem:[%s3 + $0x78] sm:$0xff]
    %v180 = vld [vmem:[%s4] sm:$0x1]
    %v182 = vlaneseq
    %v183 = vshrl.u32 %v182, 7
    %v184 = vsub.s32 0, %v183
    %v185 = vrot.slane %v180, %v184
    %187 = vmatprep.subr.mxu0 0.0
    %188 = vmatpush1.msra.mxu0 %v164
    %189 = vmatprep.subr.mxu0 0.0
    %190 = vmatpush1.msra.mxu0 %v165
    %191 = vmatprep.subr.mxu0 0.0
    %192 = vmatpush1.msra.mxu0 %v166
    %193 = vmatprep.subr.mxu0 0.0
    %194 = vmatpush1.msra.mxu0 %v167
    %195 = vmatprep.subr.mxu0 0.0
    %196 = vmatpush1.msra.mxu0 %v168
    %197 = vmatprep.subr.mxu0 0.0
    %198 = vmatpush1.msra.mxu0 %v169
    %199 = vmatprep.subr.mxu0 0.0
    %200 = vmatpush1.msra.mxu0 %v170
    %201 = vmatprep.subr.mxu0 0.0
    %202 = vmatpush1.msra.mxu0 %v171
    %203 = vmatprep.subr.mxu0 0.0
    %204 = vmatpush1.msra.mxu0 %v172
    %205 = vmatprep.subr.mxu0 0.0
    %206 = vmatpush1.msra.mxu0 %v173
    %207 = vmatprep.subr.mxu0 0.0
    %208 = vmatpush1.msra.mxu0 %v174
    %209 = vmatprep.subr.mxu0 0.0
    %210 = vmatpush1.msra.mxu0 %v175
    %211 = vmatprep.subr.mxu0 0.0
    %212 = vmatpush1.msra.mxu0 %v176
    %213 = vmatprep.subr.mxu0 0.0
    %214 = vmatpush1.msra.mxu0 %v177
    %215 = vmatprep.subr.mxu0 0.0
    %216 = vmatpush1.msra.mxu0 %v178
    %217 = vmatprep.subr.mxu0 0.0
    %218 = vmatpush1.msra.mxu0 %v179
    %219 = vmatprep.subr.mxu0 0.0
    %220 = vmatpush1.msra.mxu0 0.0
    %221 = vmatprep.subr.mxu0 0.0
    %222 = vmatpush1.msra.mxu0 0.0
    %223 = vmatprep.subr.mxu0 0.0
    %224 = vmatpush1.msra.mxu0 0.0
    %225 = vmatprep.subr.mxu0 0.0
    %226 = vmatpush1.msra.mxu0 0.0
    %227 = vmatprep.subr.mxu0 0.0
    %228 = vmatpush1.msra.mxu0 0.0
    %229 = vmatprep.subr.mxu0 0.0
    %230 = vmatpush1.msra.mxu0 0.0
    %231 = vmatprep.subr.mxu0 0.0
    %232 = vmatpush1.msra.mxu0 0.0
    %233 = vmatprep.subr.mxu0 0.0
    %234 = vmatpush1.msra.mxu0 0.0
    %235 = vmatprep.subr.mxu0 0.0
    %236 = vmatpush1.msra.mxu0 0.0
    %237 = vmatprep.subr.mxu0 0.0
    %238 = vmatpush1.msra.mxu0 0.0
    %239 = vmatprep.subr.mxu0 0.0
    %240 = vmatpush1.msra.mxu0 0.0
    %241 = vmatprep.subr.mxu0 0.0
    %242 = vmatpush1.msra.mxu0 0.0
    %243 = vmatprep.subr.mxu0 0.0
    %244 = vmatpush1.msra.mxu0 0.0
    %245 = vmatprep.subr.mxu0 0.0
    %246 = vmatpush1.msra.mxu0 0.0
    %247 = vmatprep.subr.mxu0 0.0
    %248 = vmatpush1.msra.mxu0 0.0
    %249 = vmatprep.subr.mxu0 0.0
    %250 = vmatpush1.msra.mxu0 0.0
    %251 = vmatprep.mubr.f32.mxu0 0.0
    %252 = vmatmul.mubr.f32.gmra.mrb[0].mxu0 %v161
    %v253 = vpop.f32.mrb[0].mxu0
    %v254 = vadd.f32 %v185, %v253
    %v255 = vpop.f32.mrb[0].mxu0
    %256 = vmatprep.mubr.f32.mxu0 0.0
    %257 = vmatmul.mubr.f32.gmra.mrb[0].mxu0 %v163
    %v258 = vpop.f32.mrb[0].mxu0
    %v259 = vadd.f32 %v185, %v258
    %v260 = vpop.f32.mrb[0].mxu0
    %261 = vdwg.mxu0
    %vm262 = vcmask 15360
    %263 = vst.msk [vmem:[%s5] sm:$0xff] %vm262, %v254
    %264 = vst.msk [vmem:[%s5 + $0x8] sm:$0xff] %vm262, %v259
    // Predicated region
    $region26: #{tpu_custom_call.1} parent=1 // pred_check
      _
    $region27: #{tpu_custom_call.1} parent=1 // pred_check_branch
      %266 = sbr.rel (0) target = $region29
    $region28: #{tpu_custom_call.1} parent=1 // pred_region
      _
    $region29: #{tpu_custom_call.1} parent=1 // pred_fallthru
      _
    // Predicated region
    $region30: #{tpu_custom_call.1} parent=1 // pred_check
      _
    $region31: #{tpu_custom_call.1} parent=1 // pred_check_branch
      %268 = sbr.rel (0) target = $region33
    $region32: #{tpu_custom_call.1} parent=1 // pred_region
      _
    $region33: #{tpu_custom_call.1} parent=1 // pred_fallthru
      _
    %269 = vsyncpa [#allocation3], 1

</llo_original>
